<compile_context>
chip_gen: v7x
topology: tpu7x:2x2x1
jax: 0.10.0
libtpu: 0.0.40
codegen_flags: <defaults>
</compile_context>

<pallas_src>
import functools
import numpy as np
import jax
import jax.numpy as jnp
from jax.experimental import pallas as pl
from jax.experimental.pallas import tpu as pltpu

# FocalLoss default hyperparameters (from the module's __init__ defaults).
ALPHA = 0.25
GAMMA = 2            # integer power -> lowered to a single multiply
WEIGHT = 1.0
SCALE = 1.0
EPS = 1e-9
IGNORE_LABEL = -1.0
FROM_LOGITS = False
SIZE_AVERAGE = True

_SUB_ROWS = 512                 # rows per in-block sub-chunk (bounds f32 temps)
_TARGET_BLOCK_BYTES = 2 << 20   # ~2 MiB of combined input bytes per grid step


def _focal_loss_kernel(pred_ref, label_ref, lsum_ref, wsum_ref, lacc, wacc,
                       *, r_valid, tr, sub_rows, rpc, any_tail):
    """One (tr, 128) row-chunk of one (batch, core-split) pair.

    Accumulates lane-dense partial sums into (8, 128) VMEM scratch and writes
    per-(batch, split) totals on the last row-chunk of the split.
    """
    s = pl.program_id(1)          # core-split index
    j = pl.program_id(2)          # row-chunk index within the split

    @pl.when(j == 0)
    def _():
        lacc[...] = jnp.zeros_like(lacc)
        wacc[...] = jnp.zeros_like(wacc)

    # Intended global start row of this block (independent of index clamping).
    row0 = (s * rpc + j) * tr

    def accumulate(masked):
        # Static sub-chunk loop: keeps all f32 intermediates at (sub_rows,128).
        for c in range(tr // sub_rows):
            off = c * sub_rows
            p = pred_ref[off:off + sub_rows, :].astype(jnp.float32)
            lab = label_ref[off:off + sub_rows, :].astype(jnp.float32)

            sw = lab != IGNORE_LABEL
            if masked:
                rows = (jax.lax.broadcasted_iota(jnp.int32, p.shape, 0)
                        + (row0 + off))
                sw = sw & (rows < r_valid)
            swf = sw.astype(jnp.float32)
            one_hot = lab > 0.5

            if not FROM_LOGITS:
                p = jax.nn.sigmoid(p)

            # -WEIGHT folded into the select; swf already carries the
            # sample-weight multiply, so no trailing `loss * sw`.
            alpha = swf * jnp.where(one_hot, -WEIGHT * ALPHA,
                                    -WEIGHT * (1.0 - ALPHA))
            pt = jnp.where(sw, 1.0 - jnp.abs(lab - p), 1.0)
            b = 1.0 - pt
            beta = b * b                               # GAMMA == 2
            loss = alpha * beta * jnp.log(jnp.minimum(pt + EPS, 1.0))

            # Lane-dense partial accumulation: (sub_rows,128) ->
            # (sub_rows//8, 8, 128) is a layout-free sublane split; the
            # sum(axis=0) is pure VPU adds.
            lacc[...] += loss.reshape(sub_rows // 8, 8, 128).sum(axis=0)
            wacc[...] += swf.reshape(sub_rows // 8, 8, 128).sum(axis=0)

    if any_tail:
        # Only blocks that actually overhang the true row count pay for the
        # iota mask; all others run the unmasked fast path.
        overhang = (row0 + tr) > r_valid

        @pl.when(overhang)
        def _():
            accumulate(True)

        @pl.when(jnp.logical_not(overhang))
        def _():
            accumulate(False)
    else:
        accumulate(False)

    @pl.when(j == rpc - 1)
    def _():
        lsum_ref[...] = jnp.full(lsum_ref.shape, jnp.sum(lacc[...]),
                                 dtype=jnp.float32)
        wsum_ref[...] = jnp.full(wsum_ref.shape, jnp.sum(wacc[...]),
                                 dtype=jnp.float32)


def _sublane_unit(dtype):
    # f32 -> 8, bf16 -> 16, int8/fp8 -> 32 (sublane packing unit).
    return 8 * max(1, 4 // jnp.dtype(dtype).itemsize)


@functools.partial(jax.jit, static_argnames=("block_rows", "num_splits"))
def focal_loss(pred, label, *, block_rows=None, num_splits=2):
    """pred, label: (B, C, H, W) arrays (NCHW), possibly of different dtypes
    (e.g. bf16 pred + bf16/int8 label). Returns per-batch loss of shape (B,)."""
    B = pred.shape[0]
    N = int(np.prod(pred.shape[1:]))

    pred2 = pred.reshape(B, N)
    label2 = label.reshape(B, N)

    # Pad only to a multiple of 128 lanes; padded labels = IGNORE_LABEL so
    # they contribute nothing. For 128-aligned N this is a no-op (no copy).
    n_pad = (-N) % 128
    if n_pad:
        pred2 = jnp.pad(pred2, ((0, 0), (0, n_pad)))
        label2 = jnp.pad(label2, ((0, 0), (0, n_pad)),
                         constant_values=jnp.asarray(IGNORE_LABEL,
                                                     dtype=label2.dtype))
    R = (N + n_pad) // 128
    pred3 = pred2.reshape(B, R, 128)
    label3 = label2.reshape(B, R, 128)

    # Block-row alignment must satisfy both input dtypes' sublane tiles.
    align = max(_sublane_unit(pred.dtype), _sublane_unit(label.dtype))
    itemsum = jnp.dtype(pred.dtype).itemsize + jnp.dtype(label.dtype).itemsize
    if block_rows is None:
        # ~2 MiB of combined input bytes per step, independent of dtype.
        block_rows = max(_SUB_ROWS, _TARGET_BLOCK_BYTES // (128 * itemsum))

    r_aligned = pl.cdiv(R, align) * align
    tr = min(int(block_rows), r_aligned)
    tr = max(align, (tr // align) * align)
    if tr > _SUB_ROWS:
        tr = (tr // _SUB_ROWS) * _SUB_ROWS
    sub_rows = tr if tr <= _SUB_ROWS else _SUB_ROWS

    grid_r = pl.cdiv(R, tr)
    ns = max(1, min(int(num_splits), grid_r))      # core-split (v7x 2-TC) axis
    rpc = pl.cdiv(grid_r, ns)                      # row-chunks per split
    any_tail = (ns * rpc * tr) > R                 # static: any block overhangs?

    def in_map(b, s, j):
        # Clamp so padded split steps never issue an out-of-range block DMA;
        # their contribution is fully masked in-kernel via row0 >= R.
        return (b, jnp.minimum(s * rpc + j, grid_r - 1), 0)

    def out_map(b, s, j):
        return (b, s, 0, 0)

    kernel = functools.partial(
        _focal_loss_kernel, r_valid=R, tr=tr, sub_rows=sub_rows,
        rpc=rpc, any_tail=any_tail)

    lsum_part, wsum_part = pl.pallas_call(
        kernel,
        out_shape=(jax.ShapeDtypeStruct((B, ns, 8, 128), jnp.float32),
                   jax.ShapeDtypeStruct((B, ns, 8, 128), jnp.float32)),
        grid_spec=pltpu.PrefetchScalarGridSpec(
            num_scalar_prefetch=0,
            grid=(B, ns, rpc),
            in_specs=[
                pl.BlockSpec((None, tr, 128), in_map),
                pl.BlockSpec((None, tr, 128), in_map),
            ],
            out_specs=[
                pl.BlockSpec((None, None, 8, 128), out_map),
                pl.BlockSpec((None, None, 8, 128), out_map),
            ],
            scratch_shapes=[
                pltpu.VMEM((8, 128), jnp.float32),   # loss partial sums
                pltpu.VMEM((8, 128), jnp.float32),   # sample-weight partials
            ],
        ),
        compiler_params=pltpu.CompilerParams(
            dimension_semantics=("parallel", "parallel", "arbitrary")),
    )(pred3, label3)

    # Combine the per-split partials and normalize in the wrapper.
    lsum = jnp.sum(lsum_part[:, :, 0, 0], axis=1)
    wsum = jnp.sum(wsum_part[:, :, 0, 0], axis=1)
    if SIZE_AVERAGE:
        return SCALE * lsum / (wsum + EPS)
    return SCALE * lsum


def focal_loss_ref(pred, label):
    """Pure-JAX reference mirroring the PyTorch forward."""
    pred = pred.astype(jnp.float32)
    label = label.astype(jnp.float32)
    one_hot = label > 0.5
    sw = label != IGNORE_LABEL
    swf = sw.astype(jnp.float32)
    p = jax.nn.sigmoid(pred) if not FROM_LOGITS else pred
    alpha = jnp.where(one_hot, ALPHA * swf, (1.0 - ALPHA) * swf)
    pt = jnp.where(sw, 1.0 - jnp.abs(label - p), jnp.ones_like(p))
    beta = (1.0 - pt) ** GAMMA
    loss = -alpha * beta * jnp.log(jnp.minimum(pt + EPS, 1.0))
    loss = WEIGHT * (loss * swf)
    red = tuple(range(1, label.ndim))
    tsum = jnp.sum(swf, axis=red)
    lsum = jnp.sum(loss, axis=red)
    if SIZE_AVERAGE:
        return SCALE * lsum / (tsum + EPS)
    return SCALE * lsum


if __name__ == "__main__":
    key = jax.random.PRNGKey(0)
    k1, k2, k3, k4, k5, k6 = jax.random.split(key, 6)

    # Case 1: f32, N = 1024 (128-aligned -> zero-copy path), single row-chunk.
    B, C, H, W = 2, 4, 16, 16
    pred1 = jax.random.normal(k1, (B, C, H, W), dtype=jnp.float32)
    label1 = jax.random.randint(k2, (B, C, H, W), -1, 2).astype(jnp.float32)
    out1 = jax.block_until_ready(focal_loss(pred1, label1))
    ref1 = jax.block_until_ready(focal_loss_ref(pred1, label1))
    np.testing.assert_allclose(np.asarray(out1), np.asarray(ref1),
                               rtol=1e-5, atol=1e-6)

    # Case 2: bf16 inputs (half the HBM bytes), ragged N (2500 -> pad to 2560),
    # tiny block_rows to exercise the tail mask and the 2-way core split.
    pred2 = jax.random.normal(k3, (2, 1, 50, 50), dtype=jnp.bfloat16)
    label2 = jax.random.randint(k4, (2, 1, 50, 50), -1, 2).astype(jnp.bfloat16)
    out2 = jax.block_until_ready(focal_loss(pred2, label2, block_rows=16))
    ref2 = jax.block_until_ready(focal_loss_ref(pred2, label2))
    np.testing.assert_allclose(np.asarray(out2), np.asarray(ref2),
                               rtol=1e-5, atol=1e-5)

    # Case 3: B=1 with an odd number of row-chunks -> the second split's last
    # step is fully out of range (clamped block index + full in-kernel mask).
    pred3 = jax.random.normal(k5, (1, 3, 40, 40), dtype=jnp.bfloat16)
    label3 = jax.random.randint(k6, (1, 3, 40, 40), -1, 2).astype(jnp.bfloat16)
    out3 = jax.block_until_ready(focal_loss(pred3, label3, block_rows=16))
    ref3 = jax.block_until_ready(focal_loss_ref(pred3, label3))
    np.testing.assert_allclose(np.asarray(out3), np.asarray(ref3),
                               rtol=1e-5, atol=1e-5)

    print("KERNEL_OK")
</pallas_src>

<mosaic_0001>
module attributes {stable_mosaic.version = 11 : i64} {
  func.func @_focal_loss_kernel(%arg0: i32, %arg1: i32, %arg2: i32, %arg3: memref<1x8x128xf32, #tpu.memory_space<vmem>>, %arg4: memref<1x8x128xf32, #tpu.memory_space<vmem>>, %arg5: memref<1x1x8x128xf32, #tpu.memory_space<vmem>>, %arg6: memref<1x1x8x128xf32, #tpu.memory_space<vmem>>, %arg7: memref<8x128xf32, #tpu.memory_space<vmem>>, %arg8: memref<8x128xf32, #tpu.memory_space<vmem>>) attributes {dimension_semantics = [#tpu.dimension_semantics<parallel>, #tpu.dimension_semantics<parallel>, #tpu.dimension_semantics<arbitrary>], iteration_bounds = array<i64: 2, 1, 1>, scalar_prefetch = 0 : i64, scratch_operands = 2 : i64, tpu.core_type = #tpu.core_type<tc>, window_params = [{transform_indices = @transform_0, window_bounds = array<i64: 1, 8, 128>}, {transform_indices = @transform_1, window_bounds = array<i64: 1, 8, 128>}, {transform_indices = @transform_2, window_bounds = array<i64: 1, 1, 8, 128>}, {transform_indices = @transform_3, window_bounds = array<i64: 1, 1, 8, 128>}]} {
    %c0_i32 = arith.constant 0 : i32
    %0 = arith.cmpi eq, %arg2, %c0_i32 : i32
    %1 = arith.extui %0 : i1 to i32
    %c0_i32_0 = arith.constant 0 : i32
    %2 = arith.cmpi ne, %1, %c0_i32_0 : i32
    scf.if %2 {
      %cst_27 = arith.constant 0.000000e+00 : f32
      %51 = vector.broadcast %cst_27 : f32 to vector<8x128xf32>
      %c0_28 = arith.constant 0 : index
      %c0_29 = arith.constant 0 : index
      %52 = vector.load %arg7[%c0_28, %c0_29] : memref<8x128xf32, #tpu.memory_space<vmem>>, vector<8x128xf32>
      tpu.vector_store %arg7[%c0_28, %c0_29], %51 {strides = array<i32>} : memref<8x128xf32, #tpu.memory_space<vmem>>, vector<8x128xf32>,
      %cst_30 = arith.constant 0.000000e+00 : f32
      %53 = vector.broadcast %cst_30 : f32 to vector<8x128xf32>
      %c0_31 = arith.constant 0 : index
      %c0_32 = arith.constant 0 : index
      %54 = vector.load %arg8[%c0_31, %c0_32] : memref<8x128xf32, #tpu.memory_space<vmem>>, vector<8x128xf32>
      tpu.vector_store %arg8[%c0_31, %c0_32], %53 {strides = array<i32>} : memref<8x128xf32, #tpu.memory_space<vmem>>, vector<8x128xf32>,
    } else {
    }
    %c0 = arith.constant 0 : index
    %c0_1 = arith.constant 0 : index
    %c0_2 = arith.constant 0 : index
    %3 = vector.load %arg3[%c0, %c0_1, %c0_2] : memref<1x8x128xf32, #tpu.memory_space<vmem>>, vector<1x8x128xf32>
    %4 = vector.shape_cast %3 : vector<1x8x128xf32> to vector<8x128xf32>
    %c0_3 = arith.constant 0 : index
    %c0_4 = arith.constant 0 : index
    %c0_5 = arith.constant 0 : index
    %5 = vector.load %arg4[%c0_3, %c0_4, %c0_5] : memref<1x8x128xf32, #tpu.memory_space<vmem>>, vector<1x8x128xf32>
    %6 = vector.shape_cast %5 : vector<1x8x128xf32> to vector<8x128xf32>
    %cst = arith.constant -1.000000e+00 : f32
    %7 = vector.broadcast %cst : f32 to vector<8x128xf32>
    %8 = arith.cmpf one, %6, %7 : vector<8x128xf32>
    %9 = arith.extui %8 : vector<8x128xi1> to vector<8x128xi32>
    %10 = arith.sitofp %9 : vector<8x128xi32> to vector<8x128xf32>
    %cst_6 = arith.constant 5.000000e-01 : f32
    %11 = vector.broadcast %cst_6 : f32 to vector<8x128xf32>
    %12 = arith.cmpf ogt, %6, %11 : vector<8x128xf32>
    %13 = arith.negf %4 : vector<8x128xf32>
    %14 = math.exp %13 : vector<8x128xf32>
    %cst_7 = arith.constant 1.000000e+00 : f32
    %15 = vector.broadcast %cst_7 : f32 to vector<8x128xf32>
    %16 = arith.addf %15, %14 : vector<8x128xf32>
    %17 = arith.divf %15, %16 : vector<8x128xf32>
    %cst_8 = arith.constant -2.500000e-01 : f32
    %cst_9 = arith.constant -7.500000e-01 : f32
    %18 = vector.broadcast %cst_8 : f32 to vector<8x128xf32>
    %19 = vector.broadcast %cst_9 : f32 to vector<8x128xf32>
    %20 = arith.select %12, %18, %19 : vector<8x128xi1>, vector<8x128xf32>
    %21 = arith.mulf %10, %20 : vector<8x128xf32>
    %22 = arith.subf %6, %17 : vector<8x128xf32>
    %23 = math.absf %22 : vector<8x128xf32>
    %cst_10 = arith.constant 1.000000e+00 : f32
    %24 = vector.broadcast %cst_10 : f32 to vector<8x128xf32>
    %25 = arith.subf %24, %23 : vector<8x128xf32>
    %cst_11 = arith.constant 1.000000e+00 : f32
    %26 = vector.broadcast %cst_11 : f32 to vector<8x128xf32>
    %27 = arith.select %8, %25, %26 : vector<8x128xi1>, vector<8x128xf32>
    %cst_12 = arith.constant 1.000000e+00 : f32
    %28 = vector.broadcast %cst_12 : f32 to vector<8x128xf32>
    %29 = arith.subf %28, %27 : vector<8x128xf32>
    %30 = arith.mulf %29, %29 : vector<8x128xf32>
    %31 = arith.mulf %21, %30 : vector<8x128xf32>
    %cst_13 = arith.constant 9.99999971E-10 : f32
    %32 = vector.broadcast %cst_13 : f32 to vector<8x128xf32>
    %33 = arith.addf %27, %32 : vector<8x128xf32>
    %cst_14 = arith.constant 1.000000e+00 : f32
    %34 = vector.broadcast %cst_14 : f32 to vector<8x128xf32>
    %35 = arith.minimumf %33, %34 : vector<8x128xf32>
    %36 = math.log %35 : vector<8x128xf32>
    %37 = arith.mulf %31, %36 : vector<8x128xf32>
    %c0_15 = arith.constant 0 : index
    %c0_16 = arith.constant 0 : index
    %38 = vector.load %arg7[%c0_15, %c0_16] : memref<8x128xf32, #tpu.memory_space<vmem>>, vector<8x128xf32>
    %39 = vector.shape_cast %37 : vector<8x128xf32> to vector<1x8x128xf32>
    %cst_17 = arith.constant dense<0.000000e+00> : vector<8x128xf32>
    %40 = vector.multi_reduction <add>, %39, %cst_17 [0] : vector<1x8x128xf32> to vector<8x128xf32>
    %41 = arith.addf %38, %40 : vector<8x128xf32>
    %c0_18 = arith.constant 0 : index
    %c0_19 = arith.constant 0 : index
    %42 = vector.load %arg7[%c0_18, %c0_19] : memref<8x128xf32, #tpu.memory_space<vmem>>, vector<8x128xf32>
    tpu.vector_store %arg7[%c0_18, %c0_19], %41 {strides = array<i32>} : memref<8x128xf32, #tpu.memory_space<vmem>>, vector<8x128xf32>,
    %c0_20 = arith.constant 0 : index
    %c0_21 = arith.constant 0 : index
    %43 = vector.load %arg8[%c0_20, %c0_21] : memref<8x128xf32, #tpu.memory_space<vmem>>, vector<8x128xf32>
    %44 = vector.shape_cast %10 : vector<8x128xf32> to vector<1x8x128xf32>
    %cst_22 = arith.constant dense<0.000000e+00> : vector<8x128xf32>
    %45 = vector.multi_reduction <add>, %44, %cst_22 [0] : vector<1x8x128xf32> to vector<8x128xf32>
    %46 = arith.addf %43, %45 : vector<8x128xf32>
    %c0_23 = arith.constant 0 : index
    %c0_24 = arith.constant 0 : index
    %47 = vector.load %arg8[%c0_23, %c0_24] : memref<8x128xf32, #tpu.memory_space<vmem>>, vector<8x128xf32>
    tpu.vector_store %arg8[%c0_23, %c0_24], %46 {strides = array<i32>} : memref<8x128xf32, #tpu.memory_space<vmem>>, vector<8x128xf32>,
    %c0_i32_25 = arith.constant 0 : i32
    %48 = arith.cmpi eq, %arg2, %c0_i32_25 : i32
    %49 = arith.extui %48 : i1 to i32
    %c0_i32_26 = arith.constant 0 : i32
    %50 = arith.cmpi ne, %49, %c0_i32_26 : i32
    scf.if %50 {
      %c0_27 = arith.constant 0 : index
      %c0_28 = arith.constant 0 : index
      %51 = vector.load %arg7[%c0_27, %c0_28] : memref<8x128xf32, #tpu.memory_space<vmem>>, vector<8x128xf32>
      %52 = vector.shape_cast %51 : vector<8x128xf32> to vector<1x8x128xf32>
      %cst_29 = arith.constant dense<0.000000e+00> : vector<1xf32>
      %53 = vector.multi_reduction <add>, %52, %cst_29 [1, 2] : vector<1x8x128xf32> to vector<1xf32>
      %54 = vector.shape_cast %53 : vector<1xf32> to vector<1x1x1xf32>
      %55 = vector.extract %54[0, 0, 0] : f32 from vector<1x1x1xf32>
      %56 = vector.broadcast %55 : f32 to vector<8x128xf32>
      %c0_30 = arith.constant 0 : index
      %c0_31 = arith.constant 0 : index
      %c0_32 = arith.constant 0 : index
      %c0_33 = arith.constant 0 : index
      %57 = vector.load %arg5[%c0_30, %c0_31, %c0_32, %c0_33] : memref<1x1x8x128xf32, #tpu.memory_space<vmem>>, vector<1x1x8x128xf32>
      %58 = vector.shape_cast %57 : vector<1x1x8x128xf32> to vector<8x128xf32>
      %59 = vector.shape_cast %56 : vector<8x128xf32> to vector<1x1x8x128xf32>
      tpu.vector_store %arg5[%c0_30, %c0_31, %c0_32, %c0_33], %59 {strides = array<i32>} : memref<1x1x8x128xf32, #tpu.memory_space<vmem>>, vector<1x1x8x128xf32>,
      %c0_34 = arith.constant 0 : index
      %c0_35 = arith.constant 0 : index
      %60 = vector.load %arg8[%c0_34, %c0_35] : memref<8x128xf32, #tpu.memory_space<vmem>>, vector<8x128xf32>
      %61 = vector.shape_cast %60 : vector<8x128xf32> to vector<1x8x128xf32>
      %cst_36 = arith.constant dense<0.000000e+00> : vector<1xf32>
      %62 = vector.multi_reduction <add>, %61, %cst_36 [1, 2] : vector<1x8x128xf32> to vector<1xf32>
      %63 = vector.shape_cast %62 : vector<1xf32> to vector<1x1x1xf32>
      %64 = vector.extract %63[0, 0, 0] : f32 from vector<1x1x1xf32>
      %65 = vector.broadcast %64 : f32 to vector<8x128xf32>
      %c0_37 = arith.constant 0 : index
      %c0_38 = arith.constant 0 : index
      %c0_39 = arith.constant 0 : index
      %c0_40 = arith.constant 0 : index
      %66 = vector.load %arg6[%c0_37, %c0_38, %c0_39, %c0_40] : memref<1x1x8x128xf32, #tpu.memory_space<vmem>>, vector<1x1x8x128xf32>
      %67 = vector.shape_cast %66 : vector<1x1x8x128xf32> to vector<8x128xf32>
      %68 = vector.shape_cast %65 : vector<8x128xf32> to vector<1x1x8x128xf32>
      tpu.vector_store %arg6[%c0_37, %c0_38, %c0_39, %c0_40], %68 {strides = array<i32>} : memref<1x1x8x128xf32, #tpu.memory_space<vmem>>, vector<1x1x8x128xf32>,
    } else {
    }
    return
  }
  func.func @transform_0(%arg0: i32, %arg1: i32, %arg2: i32) -> (i32, i32, i32) {
    %c1_i32 = arith.constant 1 : i32
    %0 = arith.muli %arg1, %c1_i32 : i32
    %1 = arith.addi %0, %arg2 : i32
    %c0_i32 = arith.constant 0 : i32
    %2 = arith.minsi %1, %c0_i32 : i32
    %c0_i32_0 = arith.constant 0 : i32
    %c0_i32_1 = arith.constant 0 : i32
    return %arg0, %2, %c0_i32_0 : i32, i32, i32
  }
  func.func @transform_1(%arg0: i32, %arg1: i32, %arg2: i32) -> (i32, i32, i32) {
    %c1_i32 = arith.constant 1 : i32
    %0 = arith.muli %arg1, %c1_i32 : i32
    %1 = arith.addi %0, %arg2 : i32
    %c0_i32 = arith.constant 0 : i32
    %2 = arith.minsi %1, %c0_i32 : i32
    %c0_i32_0 = arith.constant 0 : i32
    %c0_i32_1 = arith.constant 0 : i32
    return %arg0, %2, %c0_i32_0 : i32, i32, i32
  }
  func.func @transform_2(%arg0: i32, %arg1: i32, %arg2: i32) -> (i32, i32, i32, i32) {
    %c0_i32 = arith.constant 0 : i32
    %c0_i32_0 = arith.constant 0 : i32
    %c0_i32_1 = arith.constant 0 : i32
    return %arg0, %arg1, %c0_i32, %c0_i32_0 : i32, i32, i32, i32
  }
  func.func @transform_3(%arg0: i32, %arg1: i32, %arg2: i32) -> (i32, i32, i32, i32) {
    %c0_i32 = arith.constant 0 : i32
    %c0_i32_0 = arith.constant 0 : i32
    %c0_i32_1 = arith.constant 0 : i32
    return %arg0, %arg1, %c0_i32, %c0_i32_0 : i32, i32, i32, i32
  }
}

</mosaic_0001>

<llo_original>
// kernel: focal_loss.1
$region0: #{focal_loss.1}
  #allocation0 [shape = 'u32[]', space=smem, size = 0x4, offset = 0x4, fixed_abs, tag = 'smem constant byte address 0x4 - core index']
  #allocation1 [shape = 'u32[144,128]{1,0:T(1,128)}', space=vmem, size = 0x12000, scoped, tag = 'internal scratch']
  #allocation2 [shape = 'f32[8,128]{1,0:T(8,128)}', space=vmem, size = 0x1000, scoped, tag = 'scratch operand']
  #allocation3 [shape = 'f32[8,128]{1,0:T(8,128)}', space=vmem, size = 0x1000, scoped, tag = 'scratch operand']
  %s0 = inlined_call_operand.vmem [shape: f32[2,8,128], index: 0, kind: input, shape index: {}]
  %s1 = inlined_call_operand.vmem [shape: f32[2,8,128], index: 1, kind: input, shape index: {}]
  %s2 = inlined_call_operand.vmem [shape: f32[2,1,8,128], index: 2, kind: output, shape index: {0}]
  %s3 = inlined_call_operand.vmem [shape: f32[2,1,8,128], index: 3, kind: output, shape index: {1}]
  %4 = xla_tuple %s2, %s3
  %s5 = sld [smem:[#allocation0]]
  $region57: #{focal_loss.1} parent=0
    _
  %s7 = ssub.s32 1, %s5
  %s8 = scalar_select 0, %s7, %s5
  loop: start=0, step=1, limit=4
  $region2: #{focal_loss.1} parent=0 // loop_pre_header
    _
  $region3: #{focal_loss.1} parent=0 // loop_header
    %s10 = sphi 0, %s14
    %p11 = scmp.ge.s32.totalorder %s10, 4
    %s17 = sphi 0, %s36
    %s18 = sphi 0, %s32
    %s19 = sphi 0, %s28
    %s20 = sphi 0, %s17
    %s21 = sphi 0, %s18
    %s22 = sphi 0, %s19
    %s23 = sphi 0, %s20
    %s24 = sphi 0, %s21
    %s25 = sphi 0, %s22
    %s47 = sphi 0, %s49
    %s50 = sphi 0, %s47
    %s51 = sphi 0, %s50
    %s67 = sphi 0, %s51
    %s81 = sphi 0, %s83
    %s84 = sphi 0, %s81
    %s85 = sphi 0, %s84
    %s101 = sphi 0, %s85
    %s109 = sphi 0, %s111
    %s112 = sphi 0, %s109
    %s113 = sphi 0, %s112
    %s129 = sphi 0, %s113
    %s137 = sphi 0, %s139
    %s140 = sphi 0, %s137
    %s141 = sphi 0, %s140
    %s157 = sphi 0, %s141
  $region4: #{focal_loss.1} parent=0 // loop_header_branch
    %13 = sbr.rel (%p11) target = $region8
  $region5: #{focal_loss.1} parent=0 // loop_body
    %s15 = ssub.s32 %s10, 1
    %s16 = ssub.s32 %s10, 2
    %s26 = sadd.s32 1, %s19
    %p27 = scmp.ge.s32.totalorder %s26, 1
    %s28 = scalar_select %p27, 0, %s26
    %s29 = sadd.s32 1, %s18
    %s30 = scalar_select %p27, %s29, %s18
    %p31 = scmp.ge.s32.totalorder %s30, 1
    %s32 = scalar_select %p31, 0, %s30
    %s33 = sadd.s32 1, %s17
    %s34 = scalar_select %p31, %s33, %s17
    %p35 = scmp.ge.s32.totalorder %s34, 2
    %s36 = scalar_select %p35, 0, %s34
    %s37 = sadd.s32 %s18, %s19
    %p38 = scmp.lt.s32.totalorder %s37, 0
    %s39 = scalar_select %p38, %s37, 0
    %s40 = sadd.s32 %s32, %s28
    %p41 = scmp.lt.s32.totalorder %s40, 0
    %s42 = scalar_select %p41, %s40, 0
    %s43 = ssub.s32 %s17, %s36
    %s44 = ssub.s32 %s39, %s42
    %s45 = sor.u32 %s43, %s44
    %p46 = scmp.eq.s32.totalorder %s45, 0
    %s48 = sadd.s32 %s47, 1
    %s49 = scalar_select %p46, %s47, %s48
    %p52 = pneg %p46
    %p53 = scmp.eq.s32.totalorder %s10, 1
    %p54 = por %p52, %p53
    %p55 = scmp.ne.s32.totalorder %s47, %s50
    %p56 = scmp.eq.s32.totalorder %s10, 0
    %p57 = por %p55, %p56
    %p58 = scmp.ne.s32.totalorder %s47, %s50
    %p59 = scmp.eq.s32.totalorder %s15, 1
    %p60 = por %p58, %p59
    %p61 = scmp.ne.s32.totalorder %s50, %s51
    %p62 = scmp.eq.s32.totalorder %s15, 0
    %p63 = por %p61, %p62
    %p64 = scmp.ne.s32.totalorder %s50, %s51
    %p65 = scmp.eq.s32.totalorder %s16, 1
    %p66 = por %p64, %p65
    %p68 = scmp.ne.s32.totalorder %s51, %s67
    %p69 = scmp.eq.s32.totalorder %s16, 0
    %p70 = por %p68, %p69
    %s71 = sadd.s32 %s18, %s19
    %p72 = scmp.lt.s32.totalorder %s71, 0
    %s73 = scalar_select %p72, %s71, 0
    %s74 = sadd.s32 %s32, %s28
    %p75 = scmp.lt.s32.totalorder %s74, 0
    %s76 = scalar_select %p75, %s74, 0
    %s77 = ssub.s32 %s17, %s36
    %s78 = ssub.s32 %s73, %s76
    %s79 = sor.u32 %s77, %s78
    %p80 = scmp.eq.s32.totalorder %s79, 0
    %s82 = sadd.s32 %s81, 1
    %s83 = scalar_select %p80, %s81, %s82
    %p86 = pneg %p80
    %p87 = scmp.eq.s32.totalorder %s10, 1
    %p88 = por %p86, %p87
    %p89 = scmp.ne.s32.totalorder %s81, %s84
    %p90 = scmp.eq.s32.totalorder %s10, 0
    %p91 = por %p89, %p90
    %p92 = scmp.ne.s32.totalorder %s81, %s84
    %p93 = scmp.eq.s32.totalorder %s15, 1
    %p94 = por %p92, %p93
    %p95 = scmp.ne.s32.totalorder %s84, %s85
    %p96 = scmp.eq.s32.totalorder %s15, 0
    %p97 = por %p95, %p96
    %p98 = scmp.ne.s32.totalorder %s84, %s85
    %p99 = scmp.eq.s32.totalorder %s16, 1
    %p100 = por %p98, %p99
    %p102 = scmp.ne.s32.totalorder %s85, %s101
    %p103 = scmp.eq.s32.totalorder %s16, 0
    %p104 = por %p102, %p103
    %s105 = ssub.s32 %s17, %s36
    %s106 = ssub.s32 %s18, %s32
    %s107 = sor.u32 %s105, %s106
    %p108 = scmp.eq.s32.totalorder %s107, 0
    %s110 = sadd.s32 %s109, 1
    %s111 = scalar_select %p108, %s109, %s110
    %p114 = pneg %p108
    %p115 = scmp.eq.s32.totalorder %s10, 1
    %p116 = por %p114, %p115
    %p117 = scmp.ne.s32.totalorder %s109, %s112
    %p118 = scmp.eq.s32.totalorder %s10, 0
    %p119 = por %p117, %p118
    %p120 = scmp.ne.s32.totalorder %s109, %s112
    %p121 = scmp.eq.s32.totalorder %s15, 1
    %p122 = por %p120, %p121
    %p123 = scmp.ne.s32.totalorder %s112, %s113
    %p124 = scmp.eq.s32.totalorder %s15, 0
    %p125 = por %p123, %p124
    %p126 = scmp.ne.s32.totalorder %s112, %s113
    %p127 = scmp.eq.s32.totalorder %s16, 1
    %p128 = por %p126, %p127
    %p130 = scmp.ne.s32.totalorder %s113, %s129
    %p131 = scmp.eq.s32.totalorder %s16, 0
    %p132 = por %p130, %p131
    %s133 = ssub.s32 %s17, %s36
    %s134 = ssub.s32 %s18, %s32
    %s135 = sor.u32 %s133, %s134
    %p136 = scmp.eq.s32.totalorder %s135, 0
    %s138 = sadd.s32 %s137, 1
    %s139 = scalar_select %p136, %s137, %s138
    %p142 = pneg %p136
    %p143 = scmp.eq.s32.totalorder %s10, 1
    %p144 = por %p142, %p143
    %p145 = scmp.ne.s32.totalorder %s137, %s140
    %p146 = scmp.eq.s32.totalorder %s10, 0
    %p147 = por %p145, %p146
    %p148 = scmp.ne.s32.totalorder %s137, %s140
    %p149 = scmp.eq.s32.totalorder %s15, 1
    %p150 = por %p148, %p149
    %p151 = scmp.ne.s32.totalorder %s140, %s141
    %p152 = scmp.eq.s32.totalorder %s15, 0
    %p153 = por %p151, %p152
    %p154 = scmp.ne.s32.totalorder %s140, %s141
    %p155 = scmp.eq.s32.totalorder %s16, 1
    %p156 = por %p154, %p155
    %p158 = scmp.ne.s32.totalorder %s141, %s157
    %p159 = scmp.eq.s32.totalorder %s16, 0
    %p160 = por %p158, %p159
    %p161 = scmp.le.s32.totalorder 1, %s10
    %p162 = scmp.lt.s32.totalorder %s10, 3
    %p163 = pnand %p161, %p162
    %p164 = pneg %p163
    // Predicated region
    $region9: #{focal_loss.1} parent=5 // pred_check
      _
    $region10: #{focal_loss.1} parent=5 // pred_check_branch
      %166 = sbr.rel (%p163) target = $region12
    $region11: #{focal_loss.1} parent=5 // pred_region
      %s167 = ssub.s32 %s10, 1
    $region12: #{focal_loss.1} parent=5 // pred_fallthru
      _
    %p168 = scmp.lt.s32.totalorder %s10, 2
    // Predicated region
    $region13: #{focal_loss.1} parent=5 // pred_check
      %p169 = pneg %p168
    $region14: #{focal_loss.1} parent=5 // pred_check_branch
      %171 = sbr.rel (%p169) target = $region16
    $region15: #{focal_loss.1} parent=5 // pred_region
      // Predicated region
      $region17: #{focal_loss.1} parent=15 // pred_check
        %p172 = pneg %p57
      $region18: #{focal_loss.1} parent=15 // pred_check_branch
        %174 = sbr.rel (%p172) target = $region20
      $region19: #{focal_loss.1} parent=15 // pred_region
        %s175 = sadd.s32 %s18, %s19
        %p176 = scmp.lt.s32.totalorder %s175, 0
        %s177 = scalar_select %p176, %s175, 0
        %p178 = scmp.lt.s32.totalorder %s17, 1
        %s179 = scalar_select %p178, %s17, 1
        %p180 = scmp.lt.s32.totalorder %s177, 0
        %s181 = scalar_select %p180, %s177, 0
        %s182 = sadd.s32 %s181, %s179
        %s183 = smul.addr %s182, 8
        %s184 = scalar_lea.vmem %s0, %s183
        %s185 = sadd.s32 %s18, %s19
        %p186 = scmp.lt.s32.totalorder %s185, 0
        %s187 = scalar_select %p186, %s185, 0
      $region20: #{focal_loss.1} parent=15 // pred_fallthru
        _
      // Predicated region
      $region21: #{focal_loss.1} parent=15 // pred_check
        %p188 = pneg %p91
      $region22: #{focal_loss.1} parent=15 // pred_check_branch
        %190 = sbr.rel (%p188) target = $region24
      $region23: #{focal_loss.1} parent=15 // pred_region
        %s191 = sadd.s32 %s18, %s19
        %p192 = scmp.lt.s32.totalorder %s191, 0
        %s193 = scalar_select %p192, %s191, 0
        %p194 = scmp.lt.s32.totalorder %s17, 1
        %s195 = scalar_select %p194, %s17, 1
        %p196 = scmp.lt.s32.totalorder %s193, 0
        %s197 = scalar_select %p196, %s193, 0
        %s198 = sadd.s32 %s197, %s195
        %s199 = smul.addr %s198, 8
        %s200 = scalar_lea.vmem %s1, %s199
        %s201 = sadd.s32 %s18, %s19
        %p202 = scmp.lt.s32.totalorder %s201, 0
        %s203 = scalar_select %p202, %s201, 0
      $region24: #{focal_loss.1} parent=15 // pred_fallthru
        _
    $region16: #{focal_loss.1} parent=5 // pred_fallthru
      _
    %p204 = scmp.le.s32.totalorder 1, %s10
    %p205 = scmp.lt.s32.totalorder %s10, 3
    %p206 = pnand %p204, %p205
    %p207 = pneg %p206
    // Predicated region
    $region25: #{focal_loss.1} parent=5 // pred_check
      _
    $region26: #{focal_loss.1} parent=5 // pred_check_branch
      %209 = sbr.rel (%p206) target = $region28
    $region27: #{focal_loss.1} parent=5 // pred_region
      %s210 = ssub.s32 %s10, 1
      %s211 = sadd.s32 %s21, %s22
      %p212 = scmp.lt.s32.totalorder %s211, 0
      %s213 = scalar_select %p212, %s211, 0
      %p214 = scmp.lt.s32.totalorder %s20, 1
      %s215 = scalar_select %p214, %s20, 1
      %p216 = scmp.lt.s32.totalorder %s213, 0
      %s217 = scalar_select %p216, %s213, 0
      %s218 = sadd.s32 %s217, %s215
      %s219 = smul.addr %s218, 8
      %s220 = scalar_lea.vmem %s0, %s219
      %p221 = pneg %p63
      %p222 = pneg %p60
      %s223 = sadd.s32 %s21, %s22
      %p224 = scmp.lt.s32.totalorder %s223, 0
      %s225 = scalar_select %p224, %s223, 0
      %p226 = scmp.lt.s32.totalorder %s20, 1
      %s227 = scalar_select %p226, %s20, 1
      %p228 = scmp.lt.s32.totalorder %s225, 0
      %s229 = scalar_select %p228, %s225, 0
      %s230 = sadd.s32 %s229, %s227
      %s231 = smul.addr %s230, 8
      %s232 = scalar_lea.vmem %s1, %s231
      %p233 = pneg %p97
      %p234 = pneg %p94
      %p235 = pneg %p125
      %p236 = pneg %p122
      %p237 = scmp.lt.s32.totalorder %s20, 1
      %s238 = scalar_select %p237, %s20, 1
      %p239 = scmp.lt.s32.totalorder %s21, 0
      %s240 = scalar_select %p239, %s21, 0
      %s241 = sadd.s32 %s240, %s238
      %s242 = smul.addr %s241, 8
      %s243 = scalar_lea.vmem %s2, %s242
      %p244 = pneg %p153
      %p245 = pneg %p150
      %p246 = scmp.lt.s32.totalorder %s20, 1
      %s247 = scalar_select %p246, %s20, 1
      %p248 = scmp.lt.s32.totalorder %s21, 0
      %s249 = scalar_select %p248, %s21, 0
      %s250 = sadd.s32 %s249, %s247
      %s251 = smul.addr %s250, 8
      %s252 = scalar_lea.vmem %s3, %s251
      %s253 = sadd.s32 %s21, %s22
      %p254 = scmp.lt.s32.totalorder %s253, 0
      %s255 = scalar_select %p254, %s253, 0
      %p256 = scmp.lt.s32.totalorder %s20, 1
      %s257 = scalar_select %p256, %s20, 1
      %p258 = scmp.lt.s32.totalorder %s255, 0
      %s259 = scalar_select %p258, %s255, 0
      %s260 = sadd.s32 %s259, %s257
      %s261 = smul.addr %s260, 8
      %s262 = scalar_lea.vmem %s0, %s261
      %s263 = sadd.s32 %s21, %s22
      %p264 = scmp.lt.s32.totalorder %s263, 0
      %s265 = scalar_select %p264, %s263, 0
      %s266 = sadd.s32 %s21, %s22
      %p267 = scmp.lt.s32.totalorder %s266, 0
      %s268 = scalar_select %p267, %s266, 0
      %p269 = scmp.lt.s32.totalorder %s20, 1
      %s270 = scalar_select %p269, %s20, 1
      %p271 = scmp.lt.s32.totalorder %s268, 0
      %s272 = scalar_select %p271, %s268, 0
      %s273 = sadd.s32 %s272, %s270
      %s274 = smul.addr %s273, 8
      %s275 = scalar_lea.vmem %s1, %s274
      %s276 = sadd.s32 %s21, %s22
      %p277 = scmp.lt.s32.totalorder %s276, 0
      %s278 = scalar_select %p277, %s276, 0
      %p279 = scmp.lt.s32.totalorder %s20, 1
      %s280 = scalar_select %p279, %s20, 1
      %p281 = scmp.lt.s32.totalorder %s21, 0
      %s282 = scalar_select %p281, %s21, 0
      %s283 = sadd.s32 %s282, %s280
      %s284 = smul.addr %s283, 8
      %s285 = scalar_lea.vmem %s2, %s284
      %p286 = scmp.lt.s32.totalorder %s20, 1
      %s287 = scalar_select %p286, %s20, 1
      %p288 = scmp.lt.s32.totalorder %s21, 0
      %s289 = scalar_select %p288, %s21, 0
      %s290 = sadd.s32 %s289, %s287
      %s291 = smul.addr %s290, 8
      %s292 = scalar_lea.vmem %s3, %s291
      %p293 = scmp.eq.s32.totalorder %s22, 0
      // Predicated region
      $region29: #{focal_loss.1} parent=27 // pred_check
        %p294 = pneg %p293
      $region30: #{focal_loss.1} parent=27 // pred_check_branch
        %296 = sbr.rel (%p294) target = $region32
      $region31: #{focal_loss.1} parent=27 // pred_region
        %297 = vst [vmem:[#allocation2] sm:$0xff] 0.0
        %298 = vst [vmem:[#allocation3] sm:$0xff] 0.0
      $region32: #{focal_loss.1} parent=27 // pred_fallthru
        _
      %v299 = vld [vmem:[%s262] sm:$0xff]
      %v300 = vld [vmem:[%s275] sm:$0xff]
      %vm301 = vcmp.ne.f32.partialorder %v300, -1.0
      %v302 = vsel %vm301, 1, 0
      %v303 = vcvt.s32.f32 %v302
      %vm304 = vcmp.gt.f32.partialorder %v300, 0.5
      %v305 = vxor.u32 %v299, 2147483648
      %v306 = vmul.f32 %v305, 1.442695
      %v307 = vpow.pop %v306
      %v308 = vadd.f32 %v307, 1.0
      %v309 = vrcp.pop %v308
      %v310 = vmul.f32 1.0, %v309
      %v311 = vsel %vm304, -0.25, -0.75
      %v312 = vmul.f32 %v303, %v311
      %v313 = vsub.f32 %v300, %v310
      %v314 = vand.u32 2147483647, %v313
      %v315 = vsub.f32 1.0, %v314
      %v316 = vsel %vm301, %v315, 1.0
      %v317 = vsub.f32 1.0, %v316
      %v318 = vmul.f32 %v317, %v317
      %v319 = vmul.f32 %v312, %v318
      %v320 = vadd.f32 %v316, 1e-09
      %v321 = vmin.f32 %v320, 1.0
      %v322 = vlog2.pop %v321
      %v323 = vmul.f32 %v322, 0.6931472
      %v324 = vmul.f32 %v319, %v323
      %v325 = vld [vmem:[#allocation2] sm:$0xff]
      %v326 = vadd.f32 %v324, 0.0
      %v327 = vadd.f32 %v325, %v326
      %328 = vst [vmem:[#allocation2] sm:$0xff] %v327
      %v329 = vld [vmem:[#allocation3] sm:$0xff]
      %v330 = vadd.f32 %v303, 0.0
      %v331 = vadd.f32 %v329, %v330
      %332 = vst [vmem:[#allocation3] sm:$0xff] %v331
      // Predicated region
      $region33: #{focal_loss.1} parent=27 // pred_check
        %p333 = pneg %p293
      $region34: #{focal_loss.1} parent=27 // pred_check_branch
        %335 = sbr.rel (%p333) target = $region36
      $region35: #{focal_loss.1} parent=27 // pred_region
        %v336 = vld [vmem:[#allocation2] sm:$0xff]
        %337 = vadd.xlane.f32.xlu0 %v336
        %v338 = vpop.xlane.xlu0 %337
        %v339 = vrot.slane %v338, 4
        %v340 = vadd.f32 %v338, %v339
        %v341 = vrot.slane %v340, 2
        %v342 = vadd.f32 %v340, %v341
        %v343 = vrot.slane %v342, 1
        %v344 = vadd.f32 %v342, %v343
        %s345 = vtos %v344
        %v346 = vstv %s345
        %347 = vst [vmem:[%s285] sm:$0xff] %v346
        %v348 = vld [vmem:[#allocation3] sm:$0xff]
        %349 = vadd.xlane.f32.xlu0 %v348
        %v350 = vpop.xlane.xlu0 %349
        %v351 = vrot.slane %v350, 4
        %v352 = vadd.f32 %v350, %v351
        %v353 = vrot.slane %v352, 2
        %v354 = vadd.f32 %v352, %v353
        %v355 = vrot.slane %v354, 1
        %v356 = vadd.f32 %v354, %v355
        %s357 = vtos %v356
        %v358 = vstv %s357
        %359 = vst [vmem:[%s292] sm:$0xff] %v358
      $region36: #{focal_loss.1} parent=27 // pred_fallthru
        _
      %p360 = scmp.lt.s32.totalorder %s20, 1
      %s361 = scalar_select %p360, %s20, 1
      %p362 = scmp.lt.s32.totalorder %s21, 0
      %s363 = scalar_select %p362, %s21, 0
      %s364 = sadd.s32 %s363, %s361
      %s365 = smul.addr %s364, 8
      %s366 = scalar_lea.vmem %s2, %s365
      %p367 = scmp.lt.s32.totalorder %s20, 1
      %s368 = scalar_select %p367, %s20, 1
      %p369 = scmp.lt.s32.totalorder %s21, 0
      %s370 = scalar_select %p369, %s21, 0
      %s371 = sadd.s32 %s370, %s368
      %s372 = smul.addr %s371, 8
      %s373 = scalar_lea.vmem %s3, %s372
      // Predicated region
      $region37: #{focal_loss.1} parent=27 // pred_check
        %p374 = pneg %p122
      $region38: #{focal_loss.1} parent=27 // pred_check_branch
        %376 = sbr.rel (%p374) target = $region40
      $region39: #{focal_loss.1} parent=27 // pred_region
        _
      $region40: #{focal_loss.1} parent=27 // pred_fallthru
        _
      // Predicated region
      $region41: #{focal_loss.1} parent=27 // pred_check
        %p377 = pneg %p150
      $region42: #{focal_loss.1} parent=27 // pred_check_branch
        %379 = sbr.rel (%p377) target = $region44
      $region43: #{focal_loss.1} parent=27 // pred_region
        _
      $region44: #{focal_loss.1} parent=27 // pred_fallthru
        _
    $region28: #{focal_loss.1} parent=5 // pred_fallthru
      _
    %p380 = scmp.le.s32.totalorder 2, %s10
    // Predicated region
    $region45: #{focal_loss.1} parent=5 // pred_check
      %p381 = pneg %p380
    $region46: #{focal_loss.1} parent=5 // pred_check_branch
      %383 = sbr.rel (%p381) target = $region48
    $region47: #{focal_loss.1} parent=5 // pred_region
      %s384 = ssub.s32 %s10, 2
      // Predicated region
      $region49: #{focal_loss.1} parent=47 // pred_check
        %p385 = pneg %p128
      $region50: #{focal_loss.1} parent=47 // pred_check_branch
        %387 = sbr.rel (%p385) target = $region52
      $region51: #{focal_loss.1} parent=47 // pred_region
        %p388 = scmp.lt.s32.totalorder %s23, 1
        %s389 = scalar_select %p388, %s23, 1
        %p390 = scmp.lt.s32.totalorder %s24, 0
        %s391 = scalar_select %p390, %s24, 0
        %s392 = sadd.s32 %s391, %s389
        %s393 = smul.addr %s392, 8
        %s394 = scalar_lea.vmem %s2, %s393
      $region52: #{focal_loss.1} parent=47 // pred_fallthru
        _
      // Predicated region
      $region53: #{focal_loss.1} parent=47 // pred_check
        %p395 = pneg %p156
      $region54: #{focal_loss.1} parent=47 // pred_check_branch
        %397 = sbr.rel (%p395) target = $region56
      $region55: #{focal_loss.1} parent=47 // pred_region
        %p398 = scmp.lt.s32.totalorder %s23, 1
        %s399 = scalar_select %p398, %s23, 1
        %p400 = scmp.lt.s32.totalorder %s24, 0
        %s401 = scalar_select %p400, %s24, 0
        %s402 = sadd.s32 %s401, %s399
        %s403 = smul.addr %s402, 8
        %s404 = scalar_lea.vmem %s3, %s403
      $region56: #{focal_loss.1} parent=47 // pred_fallthru
        _
    $region48: #{focal_loss.1} parent=5 // pred_fallthru
      _
  $region6: #{focal_loss.1} parent=0 // loop_footer
    %s14 = sadd.s32 1, %s10
  $region7: #{focal_loss.1} parent=0 // loop_footer_branch
    %9 = sbr.rel target = $region3
  $region8: #{focal_loss.1} parent=0 // loop_exit
    _

</llo_original>
